<compile_context>
chip_gen: v7x
topology: tpu7x:2x2x1
jax: 0.10.0
libtpu: 0.0.40
codegen_flags: <defaults>
</compile_context>

<pallas_src>
import jax
import jax.numpy as jnp
from jax.experimental import pallas as pl
from jax.experimental.pallas import tpu as pltpu


def _var_dim_kernel(x_ref, o_ref):
    """x_ref: (TR, n) input tile in VMEM; o_ref: (TR, 1) unbiased row variance."""
    x = x_ref[...].astype(jnp.float32)
    n = x.shape[-1]
    # Two-pass formulation (mean, then squared deviations) — numerically sound;
    # do NOT "optimize" to E[x^2] - E[x]^2.
    mean = jnp.sum(x, axis=-1, keepdims=True) * (1.0 / n)
    diff = x - mean
    ssq = jnp.sum(diff * diff, axis=-1, keepdims=True)
    # torch default correction = 1 (unbiased); n == 1 yields NaN, same as torch.
    inv_nm1 = (1.0 / (n - 1)) if n > 1 else float("nan")
    o_ref[...] = (ssq * inv_nm1).astype(o_ref.dtype)


def _choose_row_tile(rows: int, n: int, itemsize: int) -> int:
    """Pick a row tile: multiple of 8 (f32 sublane), per-block bytes <= ~4 MiB."""
    max_block_bytes = 4 * 1024 * 1024  # x2 for double-buffering still << scoped VMEM
    tr = max_block_bytes // max(1, n * itemsize)
    tr = max(8, min(1024, tr))
    tr = (tr // 8) * 8
    rows_pad8 = ((rows + 7) // 8) * 8
    if tr >= rows_pad8:
        tr = rows_pad8  # whole (padded) problem in a single block
    return tr


def var_dim(x, keepdim: bool, row_tile: int | None = None):
    """Pallas TPU implementation of x.var(dim=-1, keepdim=keepdim), correction=1."""
    assert x.ndim >= 1
    orig_shape = x.shape
    n = orig_shape[-1]
    rows = 1
    for d in orig_shape[:-1]:
        rows *= d
    x2d = x.reshape(rows, n)

    itemsize = jnp.dtype(x.dtype).itemsize
    tr = row_tile if row_tile is not None else _choose_row_tile(rows, n, itemsize)
    assert tr % 8 == 0 and tr >= 8

    num_tiles = pl.cdiv(rows, tr)
    rows_padded = num_tiles * tr
    if rows_padded != rows:
        # Zero-pad extra rows; their (garbage) variances are sliced off below.
        x2d = jnp.pad(x2d, ((0, rows_padded - rows), (0, 0)))

    cost = pl.CostEstimate(
        flops=4 * rows_padded * n,
        transcendentals=0,
        bytes_accessed=rows_padded * n * itemsize + rows_padded * itemsize,
    )

    out2d = pl.pallas_call(
        _var_dim_kernel,
        out_shape=jax.ShapeDtypeStruct((rows_padded, 1), x.dtype),
        grid=(num_tiles,),
        in_specs=[pl.BlockSpec((tr, n), lambda i: (i, 0))],
        out_specs=pl.BlockSpec((tr, 1), lambda i: (i, 0)),
        compiler_params=pltpu.CompilerParams(
            dimension_semantics=("parallel",),      # v7x: shard rows across both TCs
            vmem_limit_bytes=32 * 1024 * 1024,      # headroom over v5e's 16 MiB default
        ),
        cost_estimate=cost,
    )(x2d)

    out = out2d[:rows]
    if keepdim:
        return out.reshape(orig_shape[:-1] + (1,))
    return out.reshape(orig_shape[:-1])


if __name__ == "__main__":
    key = jax.random.PRNGKey(0)

    # Same shape as the module's get_inputs(): (4, 4), float32, uniform [0, 1).
    x = jax.random.uniform(key, (4, 4), dtype=jnp.float32)

    out_keep = jax.block_until_ready(var_dim(x, keepdim=True))
    out_nokeep = jax.block_until_ready(var_dim(x, keepdim=False))

    ref_keep = jnp.var(x, axis=-1, keepdims=True, ddof=1)
    ref_nokeep = jnp.var(x, axis=-1, keepdims=False, ddof=1)

    assert out_keep.shape == (4, 1)
    assert out_nokeep.shape == (4,)
    assert jnp.allclose(out_keep, ref_keep, atol=1e-6, rtol=1e-5)
    assert jnp.allclose(out_nokeep, ref_nokeep, atol=1e-6, rtol=1e-5)

    # Larger 3-D case exercising row padding, multi-tile grid, and keepdim paths.
    key2 = jax.random.PRNGKey(0)
    y = jax.random.uniform(key2, (2, 37, 96), dtype=jnp.float32)
    out_y = jax.block_until_ready(var_dim(y, keepdim=False, row_tile=8))  # grid=(10,)
    ref_y = jnp.var(y, axis=-1, keepdims=False, ddof=1)
    assert out_y.shape == (2, 37)
    assert jnp.allclose(out_y, ref_y, atol=1e-6, rtol=1e-5)

    out_yk = jax.block_until_ready(var_dim(y, keepdim=True))
    ref_yk = jnp.var(y, axis=-1, keepdims=True, ddof=1)
    assert out_yk.shape == (2, 37, 1)
    assert jnp.allclose(out_yk, ref_yk, atol=1e-6, rtol=1e-5)

    print("KERNEL_OK")
</pallas_src>

<mosaic_0001>
module attributes {stable_mosaic.version = 11 : i64} {
  func.func @_var_dim_kernel(%arg0: i32, %arg1: memref<8x4xf32, #tpu.memory_space<vmem>>, %arg2: memref<8x1xf32, #tpu.memory_space<vmem>>) attributes {dimension_semantics = [#tpu.dimension_semantics<parallel>], iteration_bounds = array<i64: 1>, scalar_prefetch = 0 : i64, scratch_operands = 0 : i64, tpu.core_type = #tpu.core_type<tc>, window_params = [{transform_indices = @transform_0, window_bounds = array<i64: 8, 4>}, {transform_indices = @transform_1, window_bounds = array<i64: 8, 1>}]} {
    %c0 = arith.constant 0 : index
    %c0_0 = arith.constant 0 : index
    %0 = vector.load %arg1[%c0, %c0_0] : memref<8x4xf32, #tpu.memory_space<vmem>>, vector<8x4xf32>
    %cst = arith.constant dense<0.000000e+00> : vector<8xf32>
    %1 = vector.multi_reduction <add>, %0, %cst [1] : vector<8x4xf32> to vector<8xf32>
    %2 = vector.shape_cast %1 : vector<8xf32> to vector<8x1xf32>
    %cst_1 = arith.constant 2.500000e-01 : f32
    %3 = vector.broadcast %cst_1 : f32 to vector<8x1xf32>
    %4 = arith.mulf %2, %3 : vector<8x1xf32>
    %5 = vector.broadcast %4 : vector<8x1xf32> to vector<8x4xf32>
    %6 = arith.subf %0, %5 : vector<8x4xf32>
    %7 = arith.mulf %6, %6 : vector<8x4xf32>
    %cst_2 = arith.constant dense<0.000000e+00> : vector<8xf32>
    %8 = vector.multi_reduction <add>, %7, %cst_2 [1] : vector<8x4xf32> to vector<8xf32>
    %9 = vector.shape_cast %8 : vector<8xf32> to vector<8x1xf32>
    %cst_3 = arith.constant 0.333333343 : f32
    %10 = vector.broadcast %cst_3 : f32 to vector<8x1xf32>
    %11 = arith.mulf %9, %10 : vector<8x1xf32>
    %c0_4 = arith.constant 0 : index
    %c0_5 = arith.constant 0 : index
    %12 = vector.load %arg2[%c0_4, %c0_5] : memref<8x1xf32, #tpu.memory_space<vmem>>, vector<8x1xf32>
    tpu.vector_store %arg2[%c0_4, %c0_5], %11 {strides = array<i32>} : memref<8x1xf32, #tpu.memory_space<vmem>>, vector<8x1xf32>,
    return
  }
  func.func @transform_0(%arg0: i32) -> (i32, i32) {
    %c0_i32 = arith.constant 0 : i32
    %c0_i32_0 = arith.constant 0 : i32
    return %arg0, %c0_i32 : i32, i32
  }
  func.func @transform_1(%arg0: i32) -> (i32, i32) {
    %c0_i32 = arith.constant 0 : i32
    %c0_i32_0 = arith.constant 0 : i32
    return %arg0, %c0_i32 : i32, i32
  }
}

</mosaic_0001>

<llo_original>
// kernel: tpu_custom_call.1
$region0: #{tpu_custom_call.1}
  #allocation0 [shape = 'u32[]', space=smem, size = 0x4, offset = 0x4, fixed_abs, tag = 'smem constant byte address 0x4 - core index']
  #allocation1 [shape = 'u32[144,128]{1,0:T(1,128)}', space=vmem, size = 0x12000, scoped, tag = 'internal scratch']
  %s0 = inlined_call_operand.vmem [shape: f32[8,4], index: 0, kind: input, shape index: {}]
  %s1 = inlined_call_operand.vmem [shape: f32[8,1], index: 1, kind: output, shape index: {}]
  %s2 = sld [smem:[#allocation0]]
  $region14: #{tpu_custom_call.1} parent=0
    _
  %s4 = ssub.s32 1, %s2
  %s5 = scalar_select 0, %s4, %s2
  // Predicated region
  $region2: #{tpu_custom_call.1} parent=0 // pred_check
    _
  $region3: #{tpu_custom_call.1} parent=0 // pred_check_branch
    %7 = sbr.rel (0) target = $region5
  $region4: #{tpu_custom_call.1} parent=0 // pred_region
    _
  $region5: #{tpu_custom_call.1} parent=0 // pred_fallthru
    _
  %v8 = vld [vmem:[%s0] sm:$0xff]
  %vm9 = vcmask 31744
  %v10 = vsel %vm9, %v8, 0.0
  %11 = vadd.xlane.f32.xlu0 %v10
  %v12 = vpop.xlane.xlu0 %11
  %v13 = vmul.f32 %v12, 0.25
  %v14 = vsub.f32 %v8, %v13
  %v15 = vmul.f32 %v14, %v14
  %v16 = vsel %vm9, %v15, 0.0
  %17 = vadd.xlane.f32.xlu0 %v16
  %v18 = vpop.xlane.xlu0 %17
  %v19 = vmul.f32 %v18, 0.33333334
  %vm20 = vcmask 7168
  %21 = vst.msk [vmem:[%s1] sm:$0xff] %vm20, %v19
  // Predicated region
  $region6: #{tpu_custom_call.1} parent=0 // pred_check
    _
  $region7: #{tpu_custom_call.1} parent=0 // pred_check_branch
    %23 = sbr.rel (0) target = $region9
  $region8: #{tpu_custom_call.1} parent=0 // pred_region
    _
  $region9: #{tpu_custom_call.1} parent=0 // pred_fallthru
    _
  // Predicated region
  $region10: #{tpu_custom_call.1} parent=0 // pred_check
    _
  $region11: #{tpu_custom_call.1} parent=0 // pred_check_branch
    %25 = sbr.rel (0) target = $region13
  $region12: #{tpu_custom_call.1} parent=0 // pred_region
    _
  $region13: #{tpu_custom_call.1} parent=0 // pred_fallthru
    _

</llo_original>
